<compile_context>
chip_gen: v7x
topology: tpu7x:2x2x1
jax: 0.10.0
libtpu: 0.0.40
codegen_flags: <defaults>
</compile_context>

<pallas_src>
import functools
import math

import jax
import jax.numpy as jnp
from jax.experimental import pallas as pl
from jax.experimental.pallas import tpu as pltpu

_EPS = 1e-5
_LANE = 128          # lane width (last dim)
_BF16_SUBLANE = 16   # bf16 packs 16 rows per sublane group


def _round_up(v, m):
    return (v + m - 1) // m * m


# ----------------------------- Pallas kernels ------------------------------ #

def _mlp_layer_kernel(x_ref, w_first_ref, w_mid_ref, gamma_ref, beta_ref,
                      w_last_ref, b_last_ref, o_ref, h_ref, *,
                      num_layers, n_true):
    """One grid step == one layer of the MLP.

    x_ref:      (Np, in_pad)        bf16  padded input (resident, used at l==0)
    w_first_ref:(in_pad, hid_pad)   bf16
    w_mid_ref:  (1, hid_pad, hid_pad) bf16 blocked from the (L-2,...) stack
    gamma_ref:  (1, 1, hid_pad)     f32   BN scale for this layer
    beta_ref:   (1, 1, hid_pad)     f32   BN shift for this layer
    w_last_ref: (hid_pad, out_pad)  bf16
    b_last_ref: (1, out_pad)        f32
    o_ref:      (Np, out_pad)       f32   written only at the last layer
    h_ref:      (Np, hid_pad)       bf16  persistent activation scratch
    """
    l = pl.program_id(0)
    last = num_layers - 1
    n_pad = h_ref.shape[0]
    inv_n = jnp.float32(1.0 / n_true)

    def bn_relu(y):
        # y: (Np, hid_pad) f32.  Padded batch rows of y are exactly zero
        # (padded LHS rows are zero and there is no bias before BN -- it is
        # cancelled by the mean subtraction), so unmasked sums equal sums over
        # the true batch.  One fused pass: sum and sum-of-squares.
        s = jnp.sum(y, axis=0, keepdims=True)
        ss = jnp.sum(y * y, axis=0, keepdims=True)
        mean = s * inv_n
        var = jnp.maximum(ss * inv_n - mean * mean, 0.0)
        scale = gamma_ref[0] * jax.lax.rsqrt(var + _EPS)     # gamma folded in
        h = jnp.maximum((y - mean) * scale + beta_ref[0], 0.0)
        if n_pad != n_true:
            # Keep padded rows exactly zero so the invariant holds next layer.
            row_ids = jax.lax.broadcasted_iota(jnp.int32, (n_pad, 1), 0)
            h = jnp.where(row_ids < n_true, h, 0.0)
        return h.astype(h_ref.dtype)

    @pl.when(l == 0)
    def _():
        y = jnp.dot(x_ref[...], w_first_ref[...],
                    preferred_element_type=jnp.float32)
        h_ref[...] = bn_relu(y)

    if num_layers > 2:
        @pl.when((l > 0) & (l < last))
        def _():
            y = jnp.dot(h_ref[...], w_mid_ref[0],
                        preferred_element_type=jnp.float32)
            h_ref[...] = bn_relu(y)

    @pl.when(l == last)
    def _():
        y = jnp.dot(h_ref[...], w_last_ref[...],
                    preferred_element_type=jnp.float32)
        o_ref[...] = (y + b_last_ref[...]).astype(o_ref.dtype)


def _linear_kernel(x_ref, w_ref, b_ref, o_ref):
    """num_layers == 1 path: a single Linear layer."""
    o_ref[...] = (jnp.dot(x_ref[...], w_ref[...],
                          preferred_element_type=jnp.float32)
                  + b_ref[...]).astype(o_ref.dtype)


# ------------------------------ JAX wrappers -------------------------------- #

def _fused_forward(x, w_first, w_mid, gamma, beta, w_last, b_last, *,
                   num_layers, output_dim):
    n_true, input_dim = x.shape
    in_pad, hid_pad = w_first.shape
    out_pad = w_last.shape[1]
    n_pad = _round_up(max(n_true, _BF16_SUBLANE), _BF16_SUBLANE)

    x_pad = jnp.zeros((n_pad, in_pad), jnp.bfloat16)
    x_pad = x_pad.at[:n_true, :input_dim].set(x.astype(jnp.bfloat16))

    n_mid_slots = w_mid.shape[0]
    mid_blk = (1, w_mid.shape[1], w_mid.shape[2])
    n_bn = num_layers - 1

    kernel = functools.partial(_mlp_layer_kernel,
                               num_layers=num_layers, n_true=n_true)

    const2 = lambda l: (0, 0)
    bn_map = lambda l: (jnp.minimum(l, n_bn - 1), 0, 0)
    mid_map = lambda l: (jnp.clip(l - 1, 0, n_mid_slots - 1), 0, 0)

    out = pl.pallas_call(
        kernel,
        out_shape=jax.ShapeDtypeStruct((n_pad, out_pad), jnp.float32),
        grid_spec=pltpu.PrefetchScalarGridSpec(
            num_scalar_prefetch=0,
            grid=(num_layers,),
            in_specs=[
                pl.BlockSpec((n_pad, in_pad), const2),        # x (resident)
                pl.BlockSpec((in_pad, hid_pad), const2),      # first-layer W
                pl.BlockSpec(mid_blk, mid_map),               # middle W (double-buffered)
                pl.BlockSpec((1, 1, hid_pad), bn_map),        # gamma
                pl.BlockSpec((1, 1, hid_pad), bn_map),        # beta
                pl.BlockSpec((hid_pad, out_pad), const2),     # last-layer W
                pl.BlockSpec((1, out_pad), const2),           # last-layer bias
            ],
            out_specs=pl.BlockSpec((n_pad, out_pad), const2),
            scratch_shapes=[pltpu.VMEM((n_pad, hid_pad), jnp.bfloat16)],
        ),
        compiler_params=pltpu.CompilerParams(
            dimension_semantics=("arbitrary",),
            vmem_limit_bytes=32 * 1024 * 1024),
    )(x_pad, w_first, w_mid, gamma, beta, w_last, b_last)

    return out[:n_true, :output_dim]


def _linear_forward(x, w, b, *, output_dim):
    n_true, input_dim = x.shape
    in_pad, out_pad = w.shape
    n_pad = _round_up(max(n_true, _BF16_SUBLANE), _BF16_SUBLANE)
    x_pad = jnp.zeros((n_pad, in_pad), jnp.bfloat16)
    x_pad = x_pad.at[:n_true, :input_dim].set(x.astype(jnp.bfloat16))
    out = pl.pallas_call(
        _linear_kernel,
        out_shape=jax.ShapeDtypeStruct((n_pad, out_pad), jnp.float32),
        in_specs=[pl.BlockSpec(memory_space=pltpu.MemorySpace.VMEM)] * 3,
        out_specs=pl.BlockSpec(memory_space=pltpu.MemorySpace.VMEM),
    )(x_pad, w, b)
    return out[:n_true, :output_dim]


_fused_forward_jit = jax.jit(_fused_forward,
                             static_argnames=("num_layers", "output_dim"))
_linear_forward_jit = jax.jit(_linear_forward, static_argnames=("output_dim",))


# ------------------------------- MLP module --------------------------------- #

class MLPPallas:
    """Mirror of the PyTorch MLP; forward is one fused, layer-gridded Pallas kernel."""

    def __init__(self, num_layers, input_dim, hidden_dim, output_dim, key):
        if num_layers < 1:
            raise ValueError('number of layers should be positive!')
        self.num_layers = num_layers
        self.linear_or_not = num_layers == 1
        self.output_dim = output_dim

        if num_layers == 1:
            dims = [input_dim, output_dim]
        else:
            dims = [input_dim] + [hidden_dim] * (num_layers - 1) + [output_dim]

        # ---- unpadded parameters (nn.Linear / BatchNorm1d style init) ----
        self.weights, self.biases = [], []
        for i in range(num_layers):
            d_in, d_out = dims[i], dims[i + 1]
            key, wk, bk = jax.random.split(key, 3)
            bound = 1.0 / math.sqrt(d_in)
            w = jax.random.uniform(wk, (d_in, d_out), jnp.float32, -bound, bound)
            b = jax.random.uniform(bk, (d_out,), jnp.float32, -bound, bound)
            self.weights.append(w)
            self.biases.append(b)
            # Hidden-layer biases exist for parameter parity with PyTorch but
            # are never fed to the kernel: BN's mean subtraction cancels them.

        n_bn = max(num_layers - 1, 0)
        self.gammas = [jnp.ones((hidden_dim,), jnp.float32) for _ in range(n_bn)]
        self.betas = [jnp.zeros((hidden_dim,), jnp.float32) for _ in range(n_bn)]

        in_pad = _round_up(input_dim, _LANE)
        out_pad = _round_up(output_dim, _LANE)

        if self.linear_or_not:
            w_pad = jnp.zeros((in_pad, out_pad), jnp.float32)
            w_pad = w_pad.at[:input_dim, :output_dim].set(self.weights[0])
            self.w_single = w_pad.astype(jnp.bfloat16)
            b_pad = jnp.zeros((1, out_pad), jnp.float32)
            self.b_single = b_pad.at[0, :output_dim].set(self.biases[0])
            return

        hid_pad = _round_up(hidden_dim, _LANE)

        # Per-layer padded device buffers (bf16 MXU operands, f32 BN params).
        w_first = jnp.zeros((in_pad, hid_pad), jnp.float32)
        w_first = w_first.at[:input_dim, :hidden_dim].set(self.weights[0])
        self.w_first = w_first.astype(jnp.bfloat16)

        n_mid = num_layers - 2
        if n_mid > 0:
            w_mid = jnp.zeros((n_mid, hid_pad, hid_pad), jnp.float32)
            for i in range(n_mid):
                w_mid = w_mid.at[i, :hidden_dim, :hidden_dim].set(self.weights[1 + i])
            self.w_mid = w_mid.astype(jnp.bfloat16)
        else:
            # Tiny placeholder; the kernel statically never reads it when L == 2.
            self.w_mid = jnp.zeros((1, 8, 128), jnp.bfloat16)

        w_last = jnp.zeros((hid_pad, out_pad), jnp.float32)
        w_last = w_last.at[:hidden_dim, :output_dim].set(self.weights[-1])
        self.w_last = w_last.astype(jnp.bfloat16)

        b_last = jnp.zeros((1, out_pad), jnp.float32)
        self.b_last = b_last.at[0, :output_dim].set(self.biases[-1])

        gamma = jnp.zeros((n_bn, 1, hid_pad), jnp.float32)
        beta = jnp.zeros((n_bn, 1, hid_pad), jnp.float32)
        for i in range(n_bn):
            gamma = gamma.at[i, 0, :hidden_dim].set(self.gammas[i])
            beta = beta.at[i, 0, :hidden_dim].set(self.betas[i])
        self.gamma = gamma
        self.beta = beta

    def __call__(self, x):
        if self.linear_or_not:
            return _linear_forward_jit(x, self.w_single, self.b_single,
                                       output_dim=self.output_dim)
        return _fused_forward_jit(x, self.w_first, self.w_mid, self.gamma,
                                  self.beta, self.w_last, self.b_last,
                                  num_layers=self.num_layers,
                                  output_dim=self.output_dim)

    # -------- pure-JAX references for correctness checking --------

    def reference_f32(self, x):
        """Exact f32 mirror of the PyTorch module (train-mode BatchNorm)."""
        if self.linear_or_not:
            return x @ self.weights[0] + self.biases[0][None, :]
        h = x
        for i in range(self.num_layers - 1):
            y = h @ self.weights[i] + self.biases[i][None, :]
            mean = jnp.mean(y, axis=0, keepdims=True)
            var = jnp.mean((y - mean) ** 2, axis=0, keepdims=True)
            y_hat = (y - mean) / jnp.sqrt(var + _EPS)
            h = jnp.maximum(y_hat * self.gammas[i][None, :]
                            + self.betas[i][None, :], 0.0)
        return h @ self.weights[-1] + self.biases[-1][None, :]

    def reference_bf16(self, x):
        """Emulates the kernel's bf16-operand / f32-accumulate arithmetic."""
        def mm(a, w):
            return jnp.dot(a.astype(jnp.bfloat16), w.astype(jnp.bfloat16),
                           preferred_element_type=jnp.float32)
        if self.linear_or_not:
            return mm(x, self.weights[0]) + self.biases[0][None, :]
        n = x.shape[0]
        inv_n = jnp.float32(1.0 / n)
        h = x.astype(jnp.bfloat16)
        for i in range(self.num_layers - 1):
            y = mm(h, self.weights[i])                       # bias cancels in BN
            mean = jnp.sum(y, axis=0, keepdims=True) * inv_n
            var = jnp.maximum(jnp.sum(y * y, axis=0, keepdims=True) * inv_n
                              - mean * mean, 0.0)
            scale = self.gammas[i][None, :] * jax.lax.rsqrt(var + _EPS)
            h = jnp.maximum((y - mean) * scale + self.betas[i][None, :],
                            0.0).astype(jnp.bfloat16)
        return mm(h, self.weights[-1]) + self.biases[-1][None, :]


# ---------------------------------- main ------------------------------------ #

if __name__ == "__main__":
    key = jax.random.PRNGKey(0)
    key, xk, mk = jax.random.split(key, 3)

    num_layers, input_dim, hidden_dim, output_dim = 3, 32, 32, 16
    batch = 64

    x = jax.random.normal(xk, (batch, input_dim), jnp.float32)

    # Multi-layer path (Linear -> BN -> ReLU -> Linear -> BN -> ReLU -> Linear)
    mlp = MLPPallas(num_layers, input_dim, hidden_dim, output_dim, mk)
    out = jax.block_until_ready(mlp(x))
    assert out.shape == (batch, output_dim)

    ref_emul = mlp.reference_bf16(x)   # same bf16/f32-accum arithmetic
    assert jnp.allclose(out, ref_emul, atol=5e-3, rtol=5e-3), (
        "mismatch vs bf16-emulating reference, max abs diff = "
        f"{float(jnp.max(jnp.abs(out - ref_emul)))}")

    ref_f32 = mlp.reference_f32(x)     # PyTorch-equivalent f32 semantics
    assert jnp.allclose(out, ref_f32, atol=6e-2, rtol=6e-2), (
        "mismatch vs f32 reference, max abs diff = "
        f"{float(jnp.max(jnp.abs(out - ref_f32)))}")

    # Un-aligned batch exercises the padded-row (mask) path.
    x_odd = x[:37]
    out_odd = jax.block_until_ready(mlp(x_odd))
    assert out_odd.shape == (37, output_dim)
    ref_odd = mlp.reference_bf16(x_odd)
    assert jnp.allclose(out_odd, ref_odd, atol=5e-3, rtol=5e-3), (
        "mismatch on padded batch, max abs diff = "
        f"{float(jnp.max(jnp.abs(out_odd - ref_odd)))}")

    # num_layers == 2 path (no middle layers).
    mlp2 = MLPPallas(2, input_dim, hidden_dim, output_dim, jax.random.PRNGKey(2))
    out2 = jax.block_until_ready(mlp2(x))
    assert out2.shape == (batch, output_dim)
    assert jnp.allclose(out2, mlp2.reference_bf16(x), atol=5e-3, rtol=5e-3)

    # Single-linear path (num_layers == 1)
    mlp1 = MLPPallas(1, input_dim, hidden_dim, output_dim, jax.random.PRNGKey(1))
    out1 = jax.block_until_ready(mlp1(x))
    assert out1.shape == (batch, output_dim)
    assert jnp.allclose(out1, mlp1.reference_bf16(x), atol=5e-3, rtol=5e-3)
    assert jnp.allclose(out1, mlp1.reference_f32(x), atol=2e-2, rtol=2e-2)

    print("KERNEL_OK")
</pallas_src>

<mosaic_0001>
module attributes {stable_mosaic.version = 11 : i64} {
  func.func @_mlp_layer_kernel(%arg0: i32, %arg1: memref<64x128xbf16, #tpu.memory_space<vmem>>, %arg2: memref<128x128xbf16, #tpu.memory_space<vmem>>, %arg3: memref<1x128x128xbf16, #tpu.memory_space<vmem>>, %arg4: memref<1x1x128xf32, #tpu.memory_space<vmem>>, %arg5: memref<1x1x128xf32, #tpu.memory_space<vmem>>, %arg6: memref<128x128xbf16, #tpu.memory_space<vmem>>, %arg7: memref<1x128xf32, #tpu.memory_space<vmem>>, %arg8: memref<64x128xf32, #tpu.memory_space<vmem>>, %arg9: memref<64x128xbf16, #tpu.memory_space<vmem>>) attributes {dimension_semantics = [#tpu.dimension_semantics<arbitrary>], iteration_bounds = array<i64: 3>, scalar_prefetch = 0 : i64, scratch_operands = 1 : i64, tpu.core_type = #tpu.core_type<tc>, window_params = [{pipeline_mode = #tpu.pipeline_mode<synchronous>, transform_indices = @transform_0, window_bounds = array<i64: 64, 128>}, {pipeline_mode = #tpu.pipeline_mode<synchronous>, transform_indices = @transform_1, window_bounds = array<i64: 128, 128>}, {transform_indices = @transform_2, window_bounds = array<i64: 1, 128, 128>}, {transform_indices = @transform_3, window_bounds = array<i64: 1, 1, 128>}, {transform_indices = @transform_4, window_bounds = array<i64: 1, 1, 128>}, {pipeline_mode = #tpu.pipeline_mode<synchronous>, transform_indices = @transform_5, window_bounds = array<i64: 128, 128>}, {pipeline_mode = #tpu.pipeline_mode<synchronous>, transform_indices = @transform_6, window_bounds = array<i64: 1, 128>}, {pipeline_mode = #tpu.pipeline_mode<synchronous>, transform_indices = @transform_7, window_bounds = array<i64: 64, 128>}]} {
    %c0_i32 = arith.constant 0 : i32
    %0 = arith.cmpi eq, %arg0, %c0_i32 : i32
    %1 = arith.extui %0 : i1 to i32
    %cst = arith.constant 1.562500e-02 : f32
    %c0_i32_0 = arith.constant 0 : i32
    %2 = arith.cmpi ne, %1, %c0_i32_0 : i32
    scf.if %2 {
      %c0 = arith.constant 0 : index
      %c0_6 = arith.constant 0 : index
      %11 = vector.load %arg1[%c0, %c0_6] : memref<64x128xbf16, #tpu.memory_space<vmem>>, vector<64x128xbf16>
      %c0_7 = arith.constant 0 : index
      %c0_8 = arith.constant 0 : index
      %12 = vector.load %arg2[%c0_7, %c0_8] : memref<128x128xbf16, #tpu.memory_space<vmem>>, vector<128x128xbf16>
      %cst_9 = arith.constant dense<0.000000e+00> : vector<64x128xf32>
      %13 = tpu.matmul %11, %12, %cst_9 {dimension_numbers = #tpu.dot_dimension_numbers<[1], [0], [0], [1], [0, 0, 1, 1], [], []>} : vector<64x128xbf16>, vector<128x128xbf16>, vector<64x128xf32> -> vector<64x128xf32>
      %cst_10 = arith.constant dense<0.000000e+00> : vector<128xf32>
      %14 = vector.multi_reduction <add>, %13, %cst_10 [0] : vector<64x128xf32> to vector<128xf32>
      %15 = vector.shape_cast %14 : vector<128xf32> to vector<1x128xf32>
      %16 = arith.mulf %13, %13 : vector<64x128xf32>
      %cst_11 = arith.constant dense<0.000000e+00> : vector<128xf32>
      %17 = vector.multi_reduction <add>, %16, %cst_11 [0] : vector<64x128xf32> to vector<128xf32>
      %18 = vector.shape_cast %17 : vector<128xf32> to vector<1x128xf32>
      %19 = vector.broadcast %cst : f32 to vector<1x128xf32>
      %20 = arith.mulf %15, %19 : vector<1x128xf32>
      %21 = vector.broadcast %cst : f32 to vector<1x128xf32>
      %22 = arith.mulf %18, %21 : vector<1x128xf32>
      %23 = arith.mulf %20, %20 : vector<1x128xf32>
      %24 = arith.subf %22, %23 : vector<1x128xf32>
      %cst_12 = arith.constant 0.000000e+00 : f32
      %25 = vector.broadcast %cst_12 : f32 to vector<1x128xf32>
      %26 = arith.maximumf %24, %25 : vector<1x128xf32>
      %c0_13 = arith.constant 0 : index
      %c0_14 = arith.constant 0 : index
      %c0_15 = arith.constant 0 : index
      %27 = vector.load %arg4[%c0_13, %c0_14, %c0_15] : memref<1x1x128xf32, #tpu.memory_space<vmem>>, vector<1x1x128xf32>
      %28 = vector.shape_cast %27 : vector<1x1x128xf32> to vector<1x128xf32>
      %cst_16 = arith.constant 9.99999974E-6 : f32
      %29 = vector.broadcast %cst_16 : f32 to vector<1x128xf32>
      %30 = arith.addf %26, %29 : vector<1x128xf32>
      %31 = math.rsqrt %30 : vector<1x128xf32>
      %32 = arith.mulf %28, %31 : vector<1x128xf32>
      %33 = vector.broadcast %20 : vector<1x128xf32> to vector<64x128xf32>
      %34 = arith.subf %13, %33 : vector<64x128xf32>
      %35 = vector.broadcast %32 : vector<1x128xf32> to vector<64x128xf32>
      %36 = arith.mulf %34, %35 : vector<64x128xf32>
      %c0_17 = arith.constant 0 : index
      %c0_18 = arith.constant 0 : index
      %c0_19 = arith.constant 0 : index
      %37 = vector.load %arg5[%c0_17, %c0_18, %c0_19] : memref<1x1x128xf32, #tpu.memory_space<vmem>>, vector<1x1x128xf32>
      %38 = vector.shape_cast %37 : vector<1x1x128xf32> to vector<1x128xf32>
      %39 = vector.broadcast %38 : vector<1x128xf32> to vector<64x128xf32>
      %40 = arith.addf %36, %39 : vector<64x128xf32>
      %cst_20 = arith.constant 0.000000e+00 : f32
      %41 = vector.broadcast %cst_20 : f32 to vector<64x128xf32>
      %42 = arith.maximumf %40, %41 : vector<64x128xf32>
      %43 = arith.truncf %42 : vector<64x128xf32> to vector<64x128xbf16>
      %c0_21 = arith.constant 0 : index
      %c0_22 = arith.constant 0 : index
      %44 = vector.load %arg9[%c0_21, %c0_22] : memref<64x128xbf16, #tpu.memory_space<vmem>>, vector<64x128xbf16>
      tpu.vector_store %arg9[%c0_21, %c0_22], %43 {strides = array<i32>} : memref<64x128xbf16, #tpu.memory_space<vmem>>, vector<64x128xbf16>,
    } else {
    }
    %c0_i32_1 = arith.constant 0 : i32
    %3 = arith.cmpi sgt, %arg0, %c0_i32_1 : i32
    %c2_i32 = arith.constant 2 : i32
    %4 = arith.cmpi slt, %arg0, %c2_i32 : i32
    %5 = arith.andi %3, %4 : i1
    %6 = arith.extui %5 : i1 to i32
    %cst_2 = arith.constant 1.562500e-02 : f32
    %c0_i32_3 = arith.constant 0 : i32
    %7 = arith.cmpi ne, %6, %c0_i32_3 : i32
    scf.if %7 {
      %c0 = arith.constant 0 : index
      %c0_6 = arith.constant 0 : index
      %11 = vector.load %arg9[%c0, %c0_6] : memref<64x128xbf16, #tpu.memory_space<vmem>>, vector<64x128xbf16>
      %c0_7 = arith.constant 0 : index
      %c0_8 = arith.constant 0 : index
      %c0_9 = arith.constant 0 : index
      %12 = vector.load %arg3[%c0_7, %c0_8, %c0_9] : memref<1x128x128xbf16, #tpu.memory_space<vmem>>, vector<1x128x128xbf16>
      %13 = vector.shape_cast %12 : vector<1x128x128xbf16> to vector<128x128xbf16>
      %cst_10 = arith.constant dense<0.000000e+00> : vector<64x128xf32>
      %14 = tpu.matmul %11, %13, %cst_10 {dimension_numbers = #tpu.dot_dimension_numbers<[1], [0], [0], [1], [0, 0, 1, 1], [], []>} : vector<64x128xbf16>, vector<128x128xbf16>, vector<64x128xf32> -> vector<64x128xf32>
      %cst_11 = arith.constant dense<0.000000e+00> : vector<128xf32>
      %15 = vector.multi_reduction <add>, %14, %cst_11 [0] : vector<64x128xf32> to vector<128xf32>
      %16 = vector.shape_cast %15 : vector<128xf32> to vector<1x128xf32>
      %17 = arith.mulf %14, %14 : vector<64x128xf32>
      %cst_12 = arith.constant dense<0.000000e+00> : vector<128xf32>
      %18 = vector.multi_reduction <add>, %17, %cst_12 [0] : vector<64x128xf32> to vector<128xf32>
      %19 = vector.shape_cast %18 : vector<128xf32> to vector<1x128xf32>
      %20 = vector.broadcast %cst_2 : f32 to vector<1x128xf32>
      %21 = arith.mulf %16, %20 : vector<1x128xf32>
      %22 = vector.broadcast %cst_2 : f32 to vector<1x128xf32>
      %23 = arith.mulf %19, %22 : vector<1x128xf32>
      %24 = arith.mulf %21, %21 : vector<1x128xf32>
      %25 = arith.subf %23, %24 : vector<1x128xf32>
      %cst_13 = arith.constant 0.000000e+00 : f32
      %26 = vector.broadcast %cst_13 : f32 to vector<1x128xf32>
      %27 = arith.maximumf %25, %26 : vector<1x128xf32>
      %c0_14 = arith.constant 0 : index
      %c0_15 = arith.constant 0 : index
      %c0_16 = arith.constant 0 : index
      %28 = vector.load %arg4[%c0_14, %c0_15, %c0_16] : memref<1x1x128xf32, #tpu.memory_space<vmem>>, vector<1x1x128xf32>
      %29 = vector.shape_cast %28 : vector<1x1x128xf32> to vector<1x128xf32>
      %cst_17 = arith.constant 9.99999974E-6 : f32
      %30 = vector.broadcast %cst_17 : f32 to vector<1x128xf32>
      %31 = arith.addf %27, %30 : vector<1x128xf32>
      %32 = math.rsqrt %31 : vector<1x128xf32>
      %33 = arith.mulf %29, %32 : vector<1x128xf32>
      %34 = vector.broadcast %21 : vector<1x128xf32> to vector<64x128xf32>
      %35 = arith.subf %14, %34 : vector<64x128xf32>
      %36 = vector.broadcast %33 : vector<1x128xf32> to vector<64x128xf32>
      %37 = arith.mulf %35, %36 : vector<64x128xf32>
      %c0_18 = arith.constant 0 : index
      %c0_19 = arith.constant 0 : index
      %c0_20 = arith.constant 0 : index
      %38 = vector.load %arg5[%c0_18, %c0_19, %c0_20] : memref<1x1x128xf32, #tpu.memory_space<vmem>>, vector<1x1x128xf32>
      %39 = vector.shape_cast %38 : vector<1x1x128xf32> to vector<1x128xf32>
      %40 = vector.broadcast %39 : vector<1x128xf32> to vector<64x128xf32>
      %41 = arith.addf %37, %40 : vector<64x128xf32>
      %cst_21 = arith.constant 0.000000e+00 : f32
      %42 = vector.broadcast %cst_21 : f32 to vector<64x128xf32>
      %43 = arith.maximumf %41, %42 : vector<64x128xf32>
      %44 = arith.truncf %43 : vector<64x128xf32> to vector<64x128xbf16>
      %c0_22 = arith.constant 0 : index
      %c0_23 = arith.constant 0 : index
      %45 = vector.load %arg9[%c0_22, %c0_23] : memref<64x128xbf16, #tpu.memory_space<vmem>>, vector<64x128xbf16>
      tpu.vector_store %arg9[%c0_22, %c0_23], %44 {strides = array<i32>} : memref<64x128xbf16, #tpu.memory_space<vmem>>, vector<64x128xbf16>,
    } else {
    }
    %c2_i32_4 = arith.constant 2 : i32
    %8 = arith.cmpi eq, %arg0, %c2_i32_4 : i32
    %9 = arith.extui %8 : i1 to i32
    %c0_i32_5 = arith.constant 0 : i32
    %10 = arith.cmpi ne, %9, %c0_i32_5 : i32
    scf.if %10 {
      %c0 = arith.constant 0 : index
      %c0_6 = arith.constant 0 : index
      %11 = vector.load %arg9[%c0, %c0_6] : memref<64x128xbf16, #tpu.memory_space<vmem>>, vector<64x128xbf16>
      %c0_7 = arith.constant 0 : index
      %c0_8 = arith.constant 0 : index
      %12 = vector.load %arg6[%c0_7, %c0_8] : memref<128x128xbf16, #tpu.memory_space<vmem>>, vector<128x128xbf16>
      %cst_9 = arith.constant dense<0.000000e+00> : vector<64x128xf32>
      %13 = tpu.matmul %11, %12, %cst_9 {dimension_numbers = #tpu.dot_dimension_numbers<[1], [0], [0], [1], [0, 0, 1, 1], [], []>} : vector<64x128xbf16>, vector<128x128xbf16>, vector<64x128xf32> -> vector<64x128xf32>
      %c0_10 = arith.constant 0 : index
      %c0_11 = arith.constant 0 : index
      %14 = vector.load %arg7[%c0_10, %c0_11] : memref<1x128xf32, #tpu.memory_space<vmem>>, vector<1x128xf32>
      %15 = vector.broadcast %14 : vector<1x128xf32> to vector<64x128xf32>
      %16 = arith.addf %13, %15 : vector<64x128xf32>
      %c0_12 = arith.constant 0 : index
      %c0_13 = arith.constant 0 : index
      %17 = vector.load %arg8[%c0_12, %c0_13] : memref<64x128xf32, #tpu.memory_space<vmem>>, vector<64x128xf32>
      tpu.vector_store %arg8[%c0_12, %c0_13], %16 {strides = array<i32>} : memref<64x128xf32, #tpu.memory_space<vmem>>, vector<64x128xf32>,
    } else {
    }
    return
  }
  func.func @transform_0(%arg0: i32) -> (i32, i32) {
    %c0_i32 = arith.constant 0 : i32
    %c0_i32_0 = arith.constant 0 : i32
    %c0_i32_1 = arith.constant 0 : i32
    return %c0_i32, %c0_i32_0 : i32, i32
  }
  func.func @transform_1(%arg0: i32) -> (i32, i32) {
    %c0_i32 = arith.constant 0 : i32
    %c0_i32_0 = arith.constant 0 : i32
    %c0_i32_1 = arith.constant 0 : i32
    return %c0_i32, %c0_i32_0 : i32, i32
  }
  func.func @transform_2(%arg0: i32) -> (i32, i32, i32) {
    %c1_i32 = arith.constant 1 : i32
    %0 = arith.subi %arg0, %c1_i32 : i32
    %c0_i32 = arith.constant 0 : i32
    %c0_i32_0 = arith.constant 0 : i32
    %1 = arith.maxsi %c0_i32, %0 : i32
    %2 = arith.minsi %c0_i32_0, %1 : i32
    %c0_i32_1 = arith.constant 0 : i32
    %c0_i32_2 = arith.constant 0 : i32
    %c0_i32_3 = arith.constant 0 : i32
    return %2, %c0_i32_1, %c0_i32_2 : i32, i32, i32
  }
  func.func @transform_3(%arg0: i32) -> (i32, i32, i32) {
    %c1_i32 = arith.constant 1 : i32
    %0 = arith.minsi %arg0, %c1_i32 : i32
    %c0_i32 = arith.constant 0 : i32
    %c0_i32_0 = arith.constant 0 : i32
    %c0_i32_1 = arith.constant 0 : i32
    return %0, %c0_i32, %c0_i32_0 : i32, i32, i32
  }
  func.func @transform_4(%arg0: i32) -> (i32, i32, i32) {
    %c1_i32 = arith.constant 1 : i32
    %0 = arith.minsi %arg0, %c1_i32 : i32
    %c0_i32 = arith.constant 0 : i32
    %c0_i32_0 = arith.constant 0 : i32
    %c0_i32_1 = arith.constant 0 : i32
    return %0, %c0_i32, %c0_i32_0 : i32, i32, i32
  }
  func.func @transform_5(%arg0: i32) -> (i32, i32) {
    %c0_i32 = arith.constant 0 : i32
    %c0_i32_0 = arith.constant 0 : i32
    %c0_i32_1 = arith.constant 0 : i32
    return %c0_i32, %c0_i32_0 : i32, i32
  }
  func.func @transform_6(%arg0: i32) -> (i32, i32) {
    %c0_i32 = arith.constant 0 : i32
    %c0_i32_0 = arith.constant 0 : i32
    %c0_i32_1 = arith.constant 0 : i32
    return %c0_i32, %c0_i32_0 : i32, i32
  }
  func.func @transform_7(%arg0: i32) -> (i32, i32) {
    %c0_i32 = arith.constant 0 : i32
    %c0_i32_0 = arith.constant 0 : i32
    %c0_i32_1 = arith.constant 0 : i32
    return %c0_i32, %c0_i32_0 : i32, i32
  }
}

</mosaic_0001>

<llo_original>
// kernel: _fused_forward.1
$region0: #{_fused_forward.1}
  #allocation0 [shape = 'u32[]', space=smem, size = 0x4, offset = 0x4, fixed_abs, tag = 'smem constant byte address 0x4 - core index']
  #allocation1 [shape = 'u32[144,128]{1,0:T(1,128)}', space=vmem, size = 0x12000, scoped, tag = 'internal scratch']
  #allocation2 [shape = 'bf16[64,128]{1,0:T(16,128)(2,1)}', space=vmem, size = 0x4000, scoped, tag = 'scratch operand']
  %s0 = inlined_call_operand.vmem [shape: bf16[64,128], index: 0, kind: input, shape index: {}]
  %s1 = inlined_call_operand.vmem [shape: bf16[128,128], index: 1, kind: input, shape index: {}]
  %s2 = inlined_call_operand.vmem [shape: bf16[1,128,128], index: 2, kind: input, shape index: {}]
  %s3 = inlined_call_operand.vmem [shape: f32[2,1,128], index: 3, kind: input, shape index: {}]
  %s4 = inlined_call_operand.vmem [shape: f32[2,1,128], index: 4, kind: input, shape index: {}]
  %s5 = inlined_call_operand.vmem [shape: bf16[128,128], index: 5, kind: input, shape index: {}]
  %s6 = inlined_call_operand.vmem [shape: f32[1,128], index: 6, kind: input, shape index: {}]
  %s7 = inlined_call_operand.vmem [shape: f32[64,128], index: 7, kind: output, shape index: {}]
  %s8 = sld [smem:[#allocation0]]
  $region73: #{_fused_forward.1} parent=0
    _
  %s10 = ssub.s32 1, %s8
  %s11 = scalar_select 0, %s10, %s8
  loop: start=0, step=1, limit=5
  $region2: #{_fused_forward.1} parent=0 // loop_pre_header
    _
  $region3: #{_fused_forward.1} parent=0 // loop_header
    %s13 = sphi 0, %s17
    %p14 = scmp.ge.s32.totalorder %s13, 5
    %s21 = sphi 0, %s21
    %s23 = sphi 0, %s21
    %s24 = sphi 0, %s23
    %s38 = sphi 0, %s24
    %s42 = sphi 0, %s42
    %s44 = sphi 0, %s42
    %s45 = sphi 0, %s44
    %s59 = sphi 0, %s45
    %s75 = sphi 0, %s77
    %s78 = sphi 0, %s75
    %s79 = sphi 0, %s78
    %s95 = sphi 0, %s79
    %s105 = sphi 0, %s107
    %s108 = sphi 0, %s105
    %s109 = sphi 0, %s108
    %s125 = sphi 0, %s109
    %s135 = sphi 0, %s137
    %s138 = sphi 0, %s135
    %s139 = sphi 0, %s138
    %s155 = sphi 0, %s139
    %s159 = sphi 0, %s159
    %s161 = sphi 0, %s159
    %s162 = sphi 0, %s161
    %s176 = sphi 0, %s162
    %s180 = sphi 0, %s180
    %s182 = sphi 0, %s180
    %s183 = sphi 0, %s182
    %s197 = sphi 0, %s183
    %s201 = sphi 0, %s201
    %s203 = sphi 0, %s201
    %s204 = sphi 0, %s203
    %s218 = sphi 0, %s204
  $region4: #{_fused_forward.1} parent=0 // loop_header_branch
    %16 = sbr.rel (%p14) target = $region8
  $region5: #{_fused_forward.1} parent=0 // loop_body
    %s18 = ssub.s32 %s13, 1
    %s19 = ssub.s32 %s13, 2
    %s20 = sadd.s32 %s13, 1
    %s22 = sadd.s32 %s21, 1
    %p25 = scmp.eq.s32.totalorder %s13, 2
    %p26 = scmp.ne.s32.totalorder %s21, %s23
    %p27 = scmp.eq.s32.totalorder %s13, 0
    %p28 = por %p26, %p27
    %p29 = scmp.ne.s32.totalorder %s21, %s23
    %p30 = scmp.eq.s32.totalorder %s18, 2
    %p31 = por %p29, %p30
    %p32 = scmp.ne.s32.totalorder %s23, %s24
    %p33 = scmp.eq.s32.totalorder %s18, 0
    %p34 = por %p32, %p33
    %p35 = scmp.ne.s32.totalorder %s23, %s24
    %p36 = scmp.eq.s32.totalorder %s19, 2
    %p37 = por %p35, %p36
    %p39 = scmp.ne.s32.totalorder %s24, %s38
    %p40 = scmp.eq.s32.totalorder %s19, 0
    %p41 = por %p39, %p40
    %s43 = sadd.s32 %s42, 1
    %p46 = scmp.eq.s32.totalorder %s13, 2
    %p47 = scmp.ne.s32.totalorder %s42, %s44
    %p48 = scmp.eq.s32.totalorder %s13, 0
    %p49 = por %p47, %p48
    %p50 = scmp.ne.s32.totalorder %s42, %s44
    %p51 = scmp.eq.s32.totalorder %s18, 2
    %p52 = por %p50, %p51
    %p53 = scmp.ne.s32.totalorder %s44, %s45
    %p54 = scmp.eq.s32.totalorder %s18, 0
    %p55 = por %p53, %p54
    %p56 = scmp.ne.s32.totalorder %s44, %s45
    %p57 = scmp.eq.s32.totalorder %s19, 2
    %p58 = por %p56, %p57
    %p60 = scmp.ne.s32.totalorder %s45, %s59
    %p61 = scmp.eq.s32.totalorder %s19, 0
    %p62 = por %p60, %p61
    %s63 = ssub.s32 %s13, 1
    %p64 = scmp.gt.s32.totalorder %s63, 0
    %s65 = scalar_select %p64, %s63, 0
    %p66 = scmp.lt.s32.totalorder %s65, 0
    %s67 = scalar_select %p66, %s65, 0
    %s68 = ssub.s32 %s20, 1
    %p69 = scmp.gt.s32.totalorder %s68, 0
    %s70 = scalar_select %p69, %s68, 0
    %p71 = scmp.lt.s32.totalorder %s70, 0
    %s72 = scalar_select %p71, %s70, 0
    %s73 = ssub.s32 %s67, %s72
    %p74 = scmp.eq.s32.totalorder %s73, 0
    %s76 = sadd.s32 %s75, 1
    %s77 = scalar_select %p74, %s75, %s76
    %p80 = pneg %p74
    %p81 = scmp.eq.s32.totalorder %s13, 2
    %p82 = por %p80, %p81
    %p83 = scmp.ne.s32.totalorder %s75, %s78
    %p84 = scmp.eq.s32.totalorder %s13, 0
    %p85 = por %p83, %p84
    %p86 = scmp.ne.s32.totalorder %s75, %s78
    %p87 = scmp.eq.s32.totalorder %s18, 2
    %p88 = por %p86, %p87
    %p89 = scmp.ne.s32.totalorder %s78, %s79
    %p90 = scmp.eq.s32.totalorder %s18, 0
    %p91 = por %p89, %p90
    %p92 = scmp.ne.s32.totalorder %s78, %s79
    %p93 = scmp.eq.s32.totalorder %s19, 2
    %p94 = por %p92, %p93
    %p96 = scmp.ne.s32.totalorder %s79, %s95
    %p97 = scmp.eq.s32.totalorder %s19, 0
    %p98 = por %p96, %p97
    %p99 = scmp.lt.s32.totalorder %s13, 1
    %s100 = scalar_select %p99, %s13, 1
    %p101 = scmp.lt.s32.totalorder %s20, 1
    %s102 = scalar_select %p101, %s20, 1
    %s103 = ssub.s32 %s100, %s102
    %p104 = scmp.eq.s32.totalorder %s103, 0
    %s106 = sadd.s32 %s105, 1
    %s107 = scalar_select %p104, %s105, %s106
    %p110 = pneg %p104
    %p111 = scmp.eq.s32.totalorder %s13, 2
    %p112 = por %p110, %p111
    %p113 = scmp.ne.s32.totalorder %s105, %s108
    %p114 = scmp.eq.s32.totalorder %s13, 0
    %p115 = por %p113, %p114
    %p116 = scmp.ne.s32.totalorder %s105, %s108
    %p117 = scmp.eq.s32.totalorder %s18, 2
    %p118 = por %p116, %p117
    %p119 = scmp.ne.s32.totalorder %s108, %s109
    %p120 = scmp.eq.s32.totalorder %s18, 0
    %p121 = por %p119, %p120
    %p122 = scmp.ne.s32.totalorder %s108, %s109
    %p123 = scmp.eq.s32.totalorder %s19, 2
    %p124 = por %p122, %p123
    %p126 = scmp.ne.s32.totalorder %s109, %s125
    %p127 = scmp.eq.s32.totalorder %s19, 0
    %p128 = por %p126, %p127
    %p129 = scmp.lt.s32.totalorder %s13, 1
    %s130 = scalar_select %p129, %s13, 1
    %p131 = scmp.lt.s32.totalorder %s20, 1
    %s132 = scalar_select %p131, %s20, 1
    %s133 = ssub.s32 %s130, %s132
    %p134 = scmp.eq.s32.totalorder %s133, 0
    %s136 = sadd.s32 %s135, 1
    %s137 = scalar_select %p134, %s135, %s136
    %p140 = pneg %p134
    %p141 = scmp.eq.s32.totalorder %s13, 2
    %p142 = por %p140, %p141
    %p143 = scmp.ne.s32.totalorder %s135, %s138
    %p144 = scmp.eq.s32.totalorder %s13, 0
    %p145 = por %p143, %p144
    %p146 = scmp.ne.s32.totalorder %s135, %s138
    %p147 = scmp.eq.s32.totalorder %s18, 2
    %p148 = por %p146, %p147
    %p149 = scmp.ne.s32.totalorder %s138, %s139
    %p150 = scmp.eq.s32.totalorder %s18, 0
    %p151 = por %p149, %p150
    %p152 = scmp.ne.s32.totalorder %s138, %s139
    %p153 = scmp.eq.s32.totalorder %s19, 2
    %p154 = por %p152, %p153
    %p156 = scmp.ne.s32.totalorder %s139, %s155
    %p157 = scmp.eq.s32.totalorder %s19, 0
    %p158 = por %p156, %p157
    %s160 = sadd.s32 %s159, 1
    %p163 = scmp.eq.s32.totalorder %s13, 2
    %p164 = scmp.ne.s32.totalorder %s159, %s161
    %p165 = scmp.eq.s32.totalorder %s13, 0
    %p166 = por %p164, %p165
    %p167 = scmp.ne.s32.totalorder %s159, %s161
    %p168 = scmp.eq.s32.totalorder %s18, 2
    %p169 = por %p167, %p168
    %p170 = scmp.ne.s32.totalorder %s161, %s162
    %p171 = scmp.eq.s32.totalorder %s18, 0
    %p172 = por %p170, %p171
    %p173 = scmp.ne.s32.totalorder %s161, %s162
    %p174 = scmp.eq.s32.totalorder %s19, 2
    %p175 = por %p173, %p174
    %p177 = scmp.ne.s32.totalorder %s162, %s176
    %p178 = scmp.eq.s32.totalorder %s19, 0
    %p179 = por %p177, %p178
    %s181 = sadd.s32 %s180, 1
    %p184 = scmp.eq.s32.totalorder %s13, 2
    %p185 = scmp.ne.s32.totalorder %s180, %s182
    %p186 = scmp.eq.s32.totalorder %s13, 0
    %p187 = por %p185, %p186
    %p188 = scmp.ne.s32.totalorder %s180, %s182
    %p189 = scmp.eq.s32.totalorder %s18, 2
    %p190 = por %p188, %p189
    %p191 = scmp.ne.s32.totalorder %s182, %s183
    %p192 = scmp.eq.s32.totalorder %s18, 0
    %p193 = por %p191, %p192
    %p194 = scmp.ne.s32.totalorder %s182, %s183
    %p195 = scmp.eq.s32.totalorder %s19, 2
    %p196 = por %p194, %p195
    %p198 = scmp.ne.s32.totalorder %s183, %s197
    %p199 = scmp.eq.s32.totalorder %s19, 0
    %p200 = por %p198, %p199
    %s202 = sadd.s32 %s201, 1
    %p205 = scmp.eq.s32.totalorder %s13, 2
    %p206 = scmp.ne.s32.totalorder %s201, %s203
    %p207 = scmp.eq.s32.totalorder %s13, 0
    %p208 = por %p206, %p207
    %p209 = scmp.ne.s32.totalorder %s201, %s203
    %p210 = scmp.eq.s32.totalorder %s18, 2
    %p211 = por %p209, %p210
    %p212 = scmp.ne.s32.totalorder %s203, %s204
    %p213 = scmp.eq.s32.totalorder %s18, 0
    %p214 = por %p212, %p213
    %p215 = scmp.ne.s32.totalorder %s203, %s204
    %p216 = scmp.eq.s32.totalorder %s19, 2
    %p217 = por %p215, %p216
    %p219 = scmp.ne.s32.totalorder %s204, %s218
    %p220 = scmp.eq.s32.totalorder %s19, 0
    %p221 = por %p219, %p220
    %p222 = scmp.le.s32.totalorder 1, %s13
    %p223 = scmp.lt.s32.totalorder %s13, 4
    %p224 = pnand %p222, %p223
    %p225 = pneg %p224
    // Predicated region
    $region9: #{_fused_forward.1} parent=5 // pred_check
      _
    $region10: #{_fused_forward.1} parent=5 // pred_check_branch
      %227 = sbr.rel (%p224) target = $region12
    $region11: #{_fused_forward.1} parent=5 // pred_region
      %s228 = ssub.s32 %s13, 1
      // Predicated region
      $region13: #{_fused_forward.1} parent=11 // pred_check
        %p229 = pneg %p34
      $region14: #{_fused_forward.1} parent=11 // pred_check_branch
        %231 = sbr.rel (%p229) target = $region16
      $region15: #{_fused_forward.1} parent=11 // pred_region
        _
      $region16: #{_fused_forward.1} parent=11 // pred_fallthru
        _
      // Predicated region
      $region17: #{_fused_forward.1} parent=11 // pred_check
        %p232 = pneg %p55
      $region18: #{_fused_forward.1} parent=11 // pred_check_branch
        %234 = sbr.rel (%p232) target = $region20
      $region19: #{_fused_forward.1} parent=11 // pred_region
        _
      $region20: #{_fused_forward.1} parent=11 // pred_fallthru
        _
      // Predicated region
      $region21: #{_fused_forward.1} parent=11 // pred_check
        %p235 = pneg %p172
      $region22: #{_fused_forward.1} parent=11 // pred_check_branch
        %237 = sbr.rel (%p235) target = $region24
      $region23: #{_fused_forward.1} parent=11 // pred_region
        _
      $region24: #{_fused_forward.1} parent=11 // pred_fallthru
        _
      // Predicated region
      $region25: #{_fused_forward.1} parent=11 // pred_check
        %p238 = pneg %p193
      $region26: #{_fused_forward.1} parent=11 // pred_check_branch
        %240 = sbr.rel (%p238) target = $region28
      $region27: #{_fused_forward.1} parent=11 // pred_region
        _
      $region28: #{_fused_forward.1} parent=11 // pred_fallthru
        _
    $region12: #{_fused_forward.1} parent=5 // pred_fallthru
      _
    %p241 = scmp.lt.s32.totalorder %s13, 3
    // Predicated region
    $region29: #{_fused_forward.1} parent=5 // pred_check
      %p242 = pneg %p241
    $region30: #{_fused_forward.1} parent=5 // pred_check_branch
      %244 = sbr.rel (%p242) target = $region32
    $region31: #{_fused_forward.1} parent=5 // pred_region
      // Predicated region
      $region33: #{_fused_forward.1} parent=31 // pred_check
        %p245 = pneg %p85
      $region34: #{_fused_forward.1} parent=31 // pred_check_branch
        %247 = sbr.rel (%p245) target = $region36
      $region35: #{_fused_forward.1} parent=31 // pred_region
        %s248 = ssub.s32 %s13, 1
        %p249 = scmp.gt.s32.totalorder %s248, 0
        %s250 = scalar_select %p249, %s248, 0
        %p251 = scmp.lt.s32.totalorder %s250, 0
        %s252 = scalar_select %p251, %s250, 0
        %p253 = scmp.lt.s32.totalorder %s252, 0
        %s254 = scalar_select %p253, %s252, 0
        %s255 = smul.addr %s254, 16
        %s256 = smul.addr %s255, 4
        %s257 = scalar_lea.vmem %s2, %s256
        %s258 = ssub.s32 %s13, 1
        %p259 = scmp.gt.s32.totalorder %s258, 0
        %s260 = scalar_select %p259, %s258, 0
        %p261 = scmp.lt.s32.totalorder %s260, 0
        %s262 = scalar_select %p261, %s260, 0
      $region36: #{_fused_forward.1} parent=31 // pred_fallthru
        _
      // Predicated region
      $region37: #{_fused_forward.1} parent=31 // pred_check
        %p263 = pneg %p115
      $region38: #{_fused_forward.1} parent=31 // pred_check_branch
        %265 = sbr.rel (%p263) target = $region40
      $region39: #{_fused_forward.1} parent=31 // pred_region
        %p266 = scmp.lt.s32.totalorder %s13, 1
        %s267 = scalar_select %p266, %s13, 1
        %p268 = scmp.lt.s32.totalorder %s267, 1
        %s269 = scalar_select %p268, %s267, 1
        %s270 = scalar_lea.vmem %s3, %s269
        %p271 = scmp.lt.s32.totalorder %s13, 1
        %s272 = scalar_select %p271, %s13, 1
      $region40: #{_fused_forward.1} parent=31 // pred_fallthru
        _
      // Predicated region
      $region41: #{_fused_forward.1} parent=31 // pred_check
        %p273 = pneg %p145
      $region42: #{_fused_forward.1} parent=31 // pred_check_branch
        %275 = sbr.rel (%p273) target = $region44
      $region43: #{_fused_forward.1} parent=31 // pred_region
        %p276 = scmp.lt.s32.totalorder %s13, 1
        %s277 = scalar_select %p276, %s13, 1
        %p278 = scmp.lt.s32.totalorder %s277, 1
        %s279 = scalar_select %p278, %s277, 1
        %s280 = scalar_lea.vmem %s4, %s279
        %p281 = scmp.lt.s32.totalorder %s13, 1
        %s282 = scalar_select %p281, %s13, 1
      $region44: #{_fused_forward.1} parent=31 // pred_fallthru
        _
    $region32: #{_fused_forward.1} parent=5 // pred_fallthru
      _
    %p283 = scmp.le.s32.totalorder 1, %s13
    %p284 = scmp.lt.s32.totalorder %s13, 4
    %p285 = pnand %p283, %p284
    %p286 = pneg %p285
    // Predicated region
    $region45: #{_fused_forward.1} parent=5 // pred_check
      _
    $region46: #{_fused_forward.1} parent=5 // pred_check_branch
      %288 = sbr.rel (%p285) target = $region48
    $region47: #{_fused_forward.1} parent=5 // pred_region
      %s289 = ssub.s32 %s13, 1
      %p290 = pneg %p34
      %p291 = pneg %p31
      %p292 = pneg %p55
      %p293 = pneg %p52
      %s294 = ssub.s32 %s18, 1
      %p295 = scmp.gt.s32.totalorder %s294, 0
      %s296 = scalar_select %p295, %s294, 0
      %p297 = scmp.lt.s32.totalorder %s296, 0
      %s298 = scalar_select %p297, %s296, 0
      %p299 = scmp.lt.s32.totalorder %s298, 0
      %s300 = scalar_select %p299, %s298, 0
      %s301 = smul.addr %s300, 16
      %s302 = smul.addr %s301, 4
      %s303 = scalar_lea.vmem %s2, %s302
      %p304 = pneg %p91
      %p305 = pneg %p88
      %p306 = scmp.lt.s32.totalorder %s18, 1
      %s307 = scalar_select %p306, %s18, 1
      %p308 = scmp.lt.s32.totalorder %s307, 1
      %s309 = scalar_select %p308, %s307, 1
      %s310 = scalar_lea.vmem %s3, %s309
      %p311 = pneg %p121
      %p312 = pneg %p118
      %p313 = scmp.lt.s32.totalorder %s18, 1
      %s314 = scalar_select %p313, %s18, 1
      %p315 = scmp.lt.s32.totalorder %s314, 1
      %s316 = scalar_select %p315, %s314, 1
      %s317 = scalar_lea.vmem %s4, %s316
      %p318 = pneg %p151
      %p319 = pneg %p148
      %p320 = pneg %p172
      %p321 = pneg %p169
      %p322 = pneg %p193
      %p323 = pneg %p190
      %p324 = pneg %p214
      %p325 = pneg %p211
      %s326 = ssub.s32 %s18, 1
      %p327 = scmp.gt.s32.totalorder %s326, 0
      %s328 = scalar_select %p327, %s326, 0
      %p329 = scmp.lt.s32.totalorder %s328, 0
      %s330 = scalar_select %p329, %s328, 0
      %p331 = scmp.lt.s32.totalorder %s330, 0
      %s332 = scalar_select %p331, %s330, 0
      %s333 = smul.addr %s332, 16
      %s334 = smul.addr %s333, 4
      %s335 = scalar_lea.vmem %s2, %s334
      %s336 = ssub.s32 %s18, 1
      %p337 = scmp.gt.s32.totalorder %s336, 0
      %s338 = scalar_select %p337, %s336, 0
      %p339 = scmp.lt.s32.totalorder %s338, 0
      %s340 = scalar_select %p339, %s338, 0
      %p341 = scmp.lt.s32.totalorder %s18, 1
      %s342 = scalar_select %p341, %s18, 1
      %p343 = scmp.lt.s32.totalorder %s342, 1
      %s344 = scalar_select %p343, %s342, 1
      %s345 = scalar_lea.vmem %s3, %s344
      %p346 = scmp.lt.s32.totalorder %s18, 1
      %s347 = scalar_select %p346, %s18, 1
      %p348 = scmp.lt.s32.totalorder %s18, 1
      %s349 = scalar_select %p348, %s18, 1
      %p350 = scmp.lt.s32.totalorder %s349, 1
      %s351 = scalar_select %p350, %s349, 1
      %s352 = scalar_lea.vmem %s4, %s351
      %p353 = scmp.lt.s32.totalorder %s18, 1
      %s354 = scalar_select %p353, %s18, 1
      %p356 = scmp.eq.s32.totalorder %s18, 0
      // Predicated region
      $region49: #{_fused_forward.1} parent=47 // pred_check
        %p357 = pneg %p356
      $region50: #{_fused_forward.1} parent=47 // pred_check_branch
        %359 = sbr.rel (%p357) target = $region52
      $region51: #{_fused_forward.1} parent=47 // pred_region
        %v360 = vld [vmem:[%s0] sm:$0xf]
        %v361 = vld [vmem:[%s0 + $0x4] sm:$0xf]
        %v362 = vld [vmem:[%s0 + $0x8] sm:$0xf]
        %v363 = vld [vmem:[%s0 + $0xc] sm:$0xf]
        %v364 = vld [vmem:[%s0 + $0x10] sm:$0xf]
        %v365 = vld [vmem:[%s0 + $0x14] sm:$0xf]
        %v366 = vld [vmem:[%s0 + $0x18] sm:$0xf]
        %v367 = vld [vmem:[%s0 + $0x1c] sm:$0xf]
        %v368 = vld [vmem:[%s1] sm:$0xf]
        %v369 = vld [vmem:[%s1 + $0x4] sm:$0xf]
        %v370 = vld [vmem:[%s1 + $0x8] sm:$0xf]
        %v371 = vld [vmem:[%s1 + $0xc] sm:$0xf]
        %v372 = vld [vmem:[%s1 + $0x10] sm:$0xf]
        %v373 = vld [vmem:[%s1 + $0x14] sm:$0xf]
        %v374 = vld [vmem:[%s1 + $0x18] sm:$0xf]
        %v375 = vld [vmem:[%s1 + $0x1c] sm:$0xf]
        %v376 = vld [vmem:[%s1 + $0x20] sm:$0xf]
        %v377 = vld [vmem:[%s1 + $0x24] sm:$0xf]
        %v378 = vld [vmem:[%s1 + $0x28] sm:$0xf]
        %v379 = vld [vmem:[%s1 + $0x2c] sm:$0xf]
        %v380 = vld [vmem:[%s1 + $0x30] sm:$0xf]
        %v381 = vld [vmem:[%s1 + $0x34] sm:$0xf]
        %v382 = vld [vmem:[%s1 + $0x38] sm:$0xf]
        %v383 = vld [vmem:[%s1 + $0x3c] sm:$0xf]
        %v392 = vunpack.c.l.b16 %v360
        %v393 = vunpack.c.l.b16 %v361
        %v394 = vunpack.c.l.b16 %v362
        %v395 = vunpack.c.l.b16 %v363
        %v396 = vunpack.c.l.b16 %v364
        %v397 = vunpack.c.l.b16 %v365
        %v398 = vunpack.c.l.b16 %v366
        %v399 = vunpack.c.l.b16 %v367
        %v400 = vpack.c.b16 %v393, %v392
        %v401 = vpack.c.b16 %v395, %v394
        %v402 = vpack.c.b16 %v397, %v396
        %v403 = vpack.c.b16 %v399, %v398
        %v424 = vunpack.c.l.b16 %v368
        %v425 = vunpack.c.l.b16 %v369
        %v426 = vunpack.c.l.b16 %v370
        %v427 = vunpack.c.l.b16 %v371
        %v428 = vunpack.c.l.b16 %v372
        %v429 = vunpack.c.l.b16 %v373
        %v430 = vunpack.c.l.b16 %v374
        %v431 = vunpack.c.l.b16 %v375
        %v432 = vunpack.c.l.b16 %v376
        %v433 = vunpack.c.l.b16 %v377
        %v434 = vunpack.c.l.b16 %v378
        %v435 = vunpack.c.l.b16 %v379
        %v436 = vunpack.c.l.b16 %v380
        %v437 = vunpack.c.l.b16 %v381
        %v438 = vunpack.c.l.b16 %v382
        %v439 = vunpack.c.l.b16 %v383
        %v440 = vpack.c.b16 %v425, %v424
        %v441 = vpack.c.b16 %v427, %v426
        %v442 = vpack.c.b16 %v429, %v428
        %v443 = vpack.c.b16 %v431, %v430
        %v444 = vpack.c.b16 %v433, %v432
        %v445 = vpack.c.b16 %v435, %v434
        %v446 = vpack.c.b16 %v437, %v436
        %v447 = vpack.c.b16 %v439, %v438
        %456 = vmatprep.subr.bf16.mxu0 0
        %457 = vmatpush1.bf16.msra.mxu0 %v440
        %458 = vmatprep.subr.bf16.mxu0 0
        %459 = vmatpush1.bf16.msra.mxu0 %v441
        %460 = vmatprep.subr.bf16.mxu0 0
        %461 = vmatpush1.bf16.msra.mxu0 %v442
        %462 = vmatprep.subr.bf16.mxu0 0
        %463 = vmatpush1.bf16.msra.mxu0 %v443
        %464 = vmatprep.subr.bf16.mxu0 0
        %465 = vmatpush1.bf16.msra.mxu0 %v444
        %466 = vmatprep.subr.bf16.mxu0 0
        %467 = vmatpush1.bf16.msra.mxu0 %v445
        %468 = vmatprep.subr.bf16.mxu0 0
        %469 = vmatpush1.bf16.msra.mxu0 %v446
        %470 = vmatprep.subr.bf16.mxu0 0
        %471 = vmatpush1.bf16.msra.mxu0 %v447
        %472 = vmatprep.subr.bf16.mxu0 0
        %473 = vmatpush1.bf16.msra.mxu0 0
        %474 = vmatprep.subr.bf16.mxu0 0
        %475 = vmatpush1.bf16.msra.mxu0 0
        %476 = vmatprep.subr.bf16.mxu0 0
        %477 = vmatpush1.bf16.msra.mxu0 0
        %478 = vmatprep.subr.bf16.mxu0 0
        %479 = vmatpush1.bf16.msra.mxu0 0
        %480 = vmatprep.subr.bf16.mxu0 0
        %481 = vmatpush1.bf16.msra.mxu0 0
        %482 = vmatprep.subr.bf16.mxu0 0
        %483 = vmatpush1.bf16.msra.mxu0 0
        %484 = vmatprep.subr.bf16.mxu0 0
        %485 = vmatpush1.bf16.msra.mxu0 0
        %486 = vmatprep.subr.bf16.mxu0 0
        %487 = vmatpush1.bf16.msra.mxu0 0
        %488 = vmatprep.mubr.bf16.mxu0 0
        %489 = vmatmul.mubr.bf16.gmra.mrb[0].mxu0 %v400
        %v490 = vpop.f32.mrb[0].mxu0
        %v491 = vadd.f32 0.0, %v490
        %v492 = vpop.f32.mrb[0].mxu0
        %v493 = vpop.f32.mrb[0].mxu0
        %v494 = vadd.f32 0.0, %v493
        %v495 = vpop.f32.mrb[0].mxu0
        %496 = vmatprep.mubr.bf16.mxu0 0
        %497 = vmatmul.mubr.bf16.gmra.mrb[0].mxu0 %v401
        %v498 = vpop.f32.mrb[0].mxu0
        %v499 = vadd.f32 0.0, %v498
        %v500 = vpop.f32.mrb[0].mxu0
        %v501 = vpop.f32.mrb[0].mxu0
        %v502 = vadd.f32 0.0, %v501
        %v503 = vpop.f32.mrb[0].mxu0
        %504 = vmatprep.mubr.bf16.mxu0 0
        %505 = vmatmul.mubr.bf16.gmra.mrb[0].mxu0 %v402
        %v506 = vpop.f32.mrb[0].mxu0
        %v507 = vadd.f32 0.0, %v506
        %v508 = vpop.f32.mrb[0].mxu0
        %v509 = vpop.f32.mrb[0].mxu0
        %v510 = vadd.f32 0.0, %v509
        %v511 = vpop.f32.mrb[0].mxu0
        %512 = vmatprep.mubr.bf16.mxu0 0
        %513 = vmatmul.mubr.bf16.gmra.mrb[0].mxu0 %v403
        %v514 = vpop.f32.mrb[0].mxu0
        %v515 = vadd.f32 0.0, %v514
        %v516 = vpop.f32.mrb[0].mxu0
        %v517 = vpop.f32.mrb[0].mxu0
        %v518 = vadd.f32 0.0, %v517
        %v519 = vpop.f32.mrb[0].mxu0
        %520 = vdwg.mxu0
        %v521 = vadd.f32 %v491, %v494
        %v522 = vadd.f32 %v521, %v499
        %v523 = vadd.f32 %v522, %v502
        %v524 = vadd.f32 %v523, %v507
        %v525 = vadd.f32 %v524, %v510
        %v526 = vadd.f32 %v525, %v515
        %v527 = vadd.f32 %v526, %v518
        %v528 = vrot.slane %v527, 4
        %v529 = vadd.f32 %v527, %v528
        %v530 = vrot.slane %v529, 2
        %v531 = vadd.f32 %v529, %v530
        %v532 = vrot.slane %v531, 1
        %v533 = vadd.f32 %v531, %v532
        %v534 = vmul.f32 %v491, %v491
        %v535 = vmul.f32 %v494, %v494
        %v536 = vmul.f32 %v499, %v499
        %v537 = vmul.f32 %v502, %v502
        %v538 = vmul.f32 %v507, %v507
        %v539 = vmul.f32 %v510, %v510
        %v540 = vmul.f32 %v515, %v515
        %v541 = vmul.f32 %v518, %v518
        %v542 = vadd.f32 %v534, %v535
        %v543 = vadd.f32 %v542, %v536
        %v544 = vadd.f32 %v543, %v537
        %v545 = vadd.f32 %v544, %v538
        %v546 = vadd.f32 %v545, %v539
        %v547 = vadd.f32 %v546, %v540
        %v548 = vadd.f32 %v547, %v541
        %v549 = vrot.slane %v548, 4
        %v550 = vadd.f32 %v548, %v549
        %v551 = vrot.slane %v550, 2
        %v552 = vadd.f32 %v550, %v551
        %v553 = vrot.slane %v552, 1
        %v554 = vadd.f32 %v552, %v553
        %v555 = vmul.f32 %v533, 0.015625
        %v556 = vmul.f32 %v554, 0.015625
        %v557 = vmul.f32 %v555, %v555
        %v558 = vsub.f32 %v556, %v557
        %v559 = vmax.f32 %v558, 0.0
        %v560 = vld [vmem:[%s345] sm:$0x1]
        %v561 = vadd.f32 %v559, 1e-05
        %v562 = vrsqrt.pop %v561
        %v563 = vmul.f32 %v560, %v562
        %v564 = vsub.f32 %v491, %v555
        %v565 = vsub.f32 %v494, %v555
        %v566 = vsub.f32 %v499, %v555
        %v567 = vsub.f32 %v502, %v555
        %v568 = vsub.f32 %v507, %v555
        %v569 = vsub.f32 %v510, %v555
        %v570 = vsub.f32 %v515, %v555
        %v571 = vsub.f32 %v518, %v555
        %v573 = vlaneseq
        %v574 = vshrl.u32 %v573, 7
        %v575 = vsub.s32 0, %v574
        %v576 = vrot.slane %v563, %v575
        %v578 = vmul.f32 %v564, %v576
        %v579 = vmul.f32 %v565, %v576
        %v580 = vmul.f32 %v566, %v576
        %v581 = vmul.f32 %v567, %v576
        %v582 = vmul.f32 %v568, %v576
        %v583 = vmul.f32 %v569, %v576
        %v584 = vmul.f32 %v570, %v576
        %v585 = vmul.f32 %v571, %v576
        %v586 = vld [vmem:[%s352] sm:$0x1]
        %v588 = vlaneseq
        %v589 = vshrl.u32 %v588, 7
        %v590 = vsub.s32 0, %v589
        %v591 = vrot.slane %v586, %v590
        %v593 = vadd.f32 %v578, %v591
        %v594 = vadd.f32 %v579, %v591
        %v595 = vadd.f32 %v580, %v591
        %v596 = vadd.f32 %v581, %v591
        %v597 = vadd.f32 %v582, %v591
        %v598 = vadd.f32 %v583, %v591
        %v599 = vadd.f32 %v584, %v591
        %v600 = vadd.f32 %v585, %v591
        %v601 = vmax.f32 %v593, 0.0
        %v602 = vmax.f32 %v594, 0.0
        %v603 = vmax.f32 %v595, 0.0
        %v604 = vmax.f32 %v596, 0.0
        %v605 = vmax.f32 %v597, 0.0
        %v606 = vmax.f32 %v598, 0.0
        %v607 = vmax.f32 %v599, 0.0
        %v608 = vmax.f32 %v600, 0.0
        %v609 = vpack.c.bf16 %v602, %v601
        %v610 = vpack.c.bf16 %v604, %v603
        %v611 = vpack.c.bf16 %v606, %v605
        %v612 = vpack.c.bf16 %v608, %v607
        %613 = vst [vmem:[#allocation2] sm:$0xff] %v609
        %614 = vst [vmem:[#allocation2 + $0x8] sm:$0xff] %v610
        %615 = vst [vmem:[#allocation2 + $0x10] sm:$0xff] %v611
        %616 = vst [vmem:[#allocation2 + $0x18] sm:$0xff] %v612
      $region52: #{_fused_forward.1} parent=47 // pred_fallthru
        _
      %p617 = scmp.gt.s32.totalorder %s18, 0
      %p618 = scmp.lt.s32.totalorder %s18, 2
      %p619 = pnand %p617, %p618
      %p620 = pneg %p619
      // Predicated region
      $region53: #{_fused_forward.1} parent=47 // pred_check
        _
      $region54: #{_fused_forward.1} parent=47 // pred_check_branch
        %622 = sbr.rel (%p619) target = $region56
      $region55: #{_fused_forward.1} parent=47 // pred_region
        %v623 = vld [vmem:[#allocation2] sm:$0xff]
        %v624 = vld [vmem:[#allocation2 + $0x8] sm:$0xff]
        %v625 = vld [vmem:[#allocation2 + $0x10] sm:$0xff]
        %v626 = vld [vmem:[#allocation2 + $0x18] sm:$0xff]
        %v627 = vld [vmem:[%s335] sm:$0xf]
        %v628 = vld [vmem:[%s335 + $0x4] sm:$0xf]
        %v629 = vld [vmem:[%s335 + $0x8] sm:$0xf]
        %v630 = vld [vmem:[%s335 + $0xc] sm:$0xf]
        %v631 = vld [vmem:[%s335 + $0x10] sm:$0xf]
        %v632 = vld [vmem:[%s335 + $0x14] sm:$0xf]
        %v633 = vld [vmem:[%s335 + $0x18] sm:$0xf]
        %v634 = vld [vmem:[%s335 + $0x1c] sm:$0xf]
        %v635 = vld [vmem:[%s335 + $0x20] sm:$0xf]
        %v636 = vld [vmem:[%s335 + $0x24] sm:$0xf]
        %v637 = vld [vmem:[%s335 + $0x28] sm:$0xf]
        %v638 = vld [vmem:[%s335 + $0x2c] sm:$0xf]
        %v639 = vld [vmem:[%s335 + $0x30] sm:$0xf]
        %v640 = vld [vmem:[%s335 + $0x34] sm:$0xf]
        %v641 = vld [vmem:[%s335 + $0x38] sm:$0xf]
        %v642 = vld [vmem:[%s335 + $0x3c] sm:$0xf]
        %v659 = vunpack.c.l.b16 %v627
        %v660 = vunpack.c.l.b16 %v628
        %v661 = vunpack.c.l.b16 %v629
        %v662 = vunpack.c.l.b16 %v630
        %v663 = vunpack.c.l.b16 %v631
        %v664 = vunpack.c.l.b16 %v632
        %v665 = vunpack.c.l.b16 %v633
        %v666 = vunpack.c.l.b16 %v634
        %v667 = vunpack.c.l.b16 %v635
        %v668 = vunpack.c.l.b16 %v636
        %v669 = vunpack.c.l.b16 %v637
        %v670 = vunpack.c.l.b16 %v638
        %v671 = vunpack.c.l.b16 %v639
        %v672 = vunpack.c.l.b16 %v640
        %v673 = vunpack.c.l.b16 %v641
        %v674 = vunpack.c.l.b16 %v642
        %v675 = vpack.c.b16 %v660, %v659
        %v676 = vpack.c.b16 %v662, %v661
        %v677 = vpack.c.b16 %v664, %v663
        %v678 = vpack.c.b16 %v666, %v665
        %v679 = vpack.c.b16 %v668, %v667
        %v680 = vpack.c.b16 %v670, %v669
        %v681 = vpack.c.b16 %v672, %v671
        %v682 = vpack.c.b16 %v674, %v673
        %691 = vmatprep.subr.bf16.mxu0 0
        %692 = vmatpush1.bf16.msra.mxu0 %v675
        %693 = vmatprep.subr.bf16.mxu0 0
        %694 = vmatpush1.bf16.msra.mxu0 %v676
        %695 = vmatprep.subr.bf16.mxu0 0
        %696 = vmatpush1.bf16.msra.mxu0 %v677
        %697 = vmatprep.subr.bf16.mxu0 0
        %698 = vmatpush1.bf16.msra.mxu0 %v678
        %699 = vmatprep.subr.bf16.mxu0 0
        %700 = vmatpush1.bf16.msra.mxu0 %v679
        %701 = vmatprep.subr.bf16.mxu0 0
        %702 = vmatpush1.bf16.msra.mxu0 %v680
        %703 = vmatprep.subr.bf16.mxu0 0
        %704 = vmatpush1.bf16.msra.mxu0 %v681
        %705 = vmatprep.subr.bf16.mxu0 0
        %706 = vmatpush1.bf16.msra.mxu0 %v682
        %707 = vmatprep.subr.bf16.mxu0 0
        %708 = vmatpush1.bf16.msra.mxu0 0
        %709 = vmatprep.subr.bf16.mxu0 0
        %710 = vmatpush1.bf16.msra.mxu0 0
        %711 = vmatprep.subr.bf16.mxu0 0
        %712 = vmatpush1.bf16.msra.mxu0 0
        %713 = vmatprep.subr.bf16.mxu0 0
        %714 = vmatpush1.bf16.msra.mxu0 0
        %715 = vmatprep.subr.bf16.mxu0 0
        %716 = vmatpush1.bf16.msra.mxu0 0
        %717 = vmatprep.subr.bf16.mxu0 0
        %718 = vmatpush1.bf16.msra.mxu0 0
        %719 = vmatprep.subr.bf16.mxu0 0
        %720 = vmatpush1.bf16.msra.mxu0 0
        %721 = vmatprep.subr.bf16.mxu0 0
        %722 = vmatpush1.bf16.msra.mxu0 0
        %723 = vmatprep.mubr.bf16.mxu0 0
        %724 = vmatmul.mubr.bf16.gmra.mrb[0].mxu0 %v623
        %v725 = vpop.f32.mrb[0].mxu0
        %v726 = vadd.f32 0.0, %v725
        %v727 = vpop.f32.mrb[0].mxu0
        %v728 = vpop.f32.mrb[0].mxu0
        %v729 = vadd.f32 0.0, %v728
        %v730 = vpop.f32.mrb[0].mxu0
        %731 = vmatprep.mubr.bf16.mxu0 0
        %732 = vmatmul.mubr.bf16.gmra.mrb[0].mxu0 %v624
        %v733 = vpop.f32.mrb[0].mxu0
        %v734 = vadd.f32 0.0, %v733
        %v735 = vpop.f32.mrb[0].mxu0
        %v736 = vpop.f32.mrb[0].mxu0
        %v737 = vadd.f32 0.0, %v736
        %v738 = vpop.f32.mrb[0].mxu0
        %739 = vmatprep.mubr.bf16.mxu0 0
        %740 = vmatmul.mubr.bf16.gmra.mrb[0].mxu0 %v625
        %v741 = vpop.f32.mrb[0].mxu0
        %v742 = vadd.f32 0.0, %v741
        %v743 = vpop.f32.mrb[0].mxu0
        %v744 = vpop.f32.mrb[0].mxu0
        %v745 = vadd.f32 0.0, %v744
        %v746 = vpop.f32.mrb[0].mxu0
        %747 = vmatprep.mubr.bf16.mxu0 0
        %748 = vmatmul.mubr.bf16.gmra.mrb[0].mxu0 %v626
        %v749 = vpop.f32.mrb[0].mxu0
        %v750 = vadd.f32 0.0, %v749
        %v751 = vpop.f32.mrb[0].mxu0
        %v752 = vpop.f32.mrb[0].mxu0
        %v753 = vadd.f32 0.0, %v752
        %v754 = vpop.f32.mrb[0].mxu0
        %755 = vdwg.mxu0
        %v756 = vadd.f32 %v726, %v729
        %v757 = vadd.f32 %v756, %v734
        %v758 = vadd.f32 %v757, %v737
        %v759 = vadd.f32 %v758, %v742
        %v760 = vadd.f32 %v759, %v745
        %v761 = vadd.f32 %v760, %v750
        %v762 = vadd.f32 %v761, %v753
        %v763 = vrot.slane %v762, 4
        %v764 = vadd.f32 %v762, %v763
        %v765 = vrot.slane %v764, 2
        %v766 = vadd.f32 %v764, %v765
        %v767 = vrot.slane %v766, 1
        %v768 = vadd.f32 %v766, %v767
        %v769 = vmul.f32 %v726, %v726
        %v770 = vmul.f32 %v729, %v729
        %v771 = vmul.f32 %v734, %v734
        %v772 = vmul.f32 %v737, %v737
        %v773 = vmul.f32 %v742, %v742
        %v774 = vmul.f32 %v745, %v745
        %v775 = vmul.f32 %v750, %v750
        %v776 = vmul.f32 %v753, %v753
        %v777 = vadd.f32 %v769, %v770
        %v778 = vadd.f32 %v777, %v771
        %v779 = vadd.f32 %v778, %v772
        %v780 = vadd.f32 %v779, %v773
        %v781 = vadd.f32 %v780, %v774
        %v782 = vadd.f32 %v781, %v775
        %v783 = vadd.f32 %v782, %v776
        %v784 = vrot.slane %v783, 4
        %v785 = vadd.f32 %v783, %v784
        %v786 = vrot.slane %v785, 2
        %v787 = vadd.f32 %v785, %v786
        %v788 = vrot.slane %v787, 1
        %v789 = vadd.f32 %v787, %v788
        %v790 = vmul.f32 %v768, 0.015625
        %v791 = vmul.f32 %v789, 0.015625
        %v792 = vmul.f32 %v790, %v790
        %v793 = vsub.f32 %v791, %v792
        %v794 = vmax.f32 %v793, 0.0
        %v795 = vld [vmem:[%s345] sm:$0x1]
        %v796 = vadd.f32 %v794, 1e-05
        %v797 = vrsqrt.pop %v796
        %v798 = vmul.f32 %v795, %v797
        %v799 = vsub.f32 %v726, %v790
        %v800 = vsub.f32 %v729, %v790
        %v801 = vsub.f32 %v734, %v790
        %v802 = vsub.f32 %v737, %v790
        %v803 = vsub.f32 %v742, %v790
        %v804 = vsub.f32 %v745, %v790
        %v805 = vsub.f32 %v750, %v790
        %v806 = vsub.f32 %v753, %v790
        %v808 = vlaneseq
        %v809 = vshrl.u32 %v808, 7
        %v810 = vsub.s32 0, %v809
        %v811 = vrot.slane %v798, %v810
        %v813 = vmul.f32 %v799, %v811
        %v814 = vmul.f32 %v800, %v811
        %v815 = vmul.f32 %v801, %v811
        %v816 = vmul.f32 %v802, %v811
        %v817 = vmul.f32 %v803, %v811
        %v818 = vmul.f32 %v804, %v811
        %v819 = vmul.f32 %v805, %v811
        %v820 = vmul.f32 %v806, %v811
        %v821 = vld [vmem:[%s352] sm:$0x1]
        %v823 = vlaneseq
        %v824 = vshrl.u32 %v823, 7
        %v825 = vsub.s32 0, %v824
        %v826 = vrot.slane %v821, %v825
        %v828 = vadd.f32 %v813, %v826
        %v829 = vadd.f32 %v814, %v826
        %v830 = vadd.f32 %v815, %v826
        %v831 = vadd.f32 %v816, %v826
        %v832 = vadd.f32 %v817, %v826
        %v833 = vadd.f32 %v818, %v826
        %v834 = vadd.f32 %v819, %v826
        %v835 = vadd.f32 %v820, %v826
        %v836 = vmax.f32 %v828, 0.0
        %v837 = vmax.f32 %v829, 0.0
        %v838 = vmax.f32 %v830, 0.0
        %v839 = vmax.f32 %v831, 0.0
        %v840 = vmax.f32 %v832, 0.0
        %v841 = vmax.f32 %v833, 0.0
        %v842 = vmax.f32 %v834, 0.0
        %v843 = vmax.f32 %v835, 0.0
        %v844 = vpack.c.bf16 %v837, %v836
        %v845 = vpack.c.bf16 %v839, %v838
        %v846 = vpack.c.bf16 %v841, %v840
        %v847 = vpack.c.bf16 %v843, %v842
        %848 = vst [vmem:[#allocation2] sm:$0xff] %v844
        %849 = vst [vmem:[#allocation2 + $0x8] sm:$0xff] %v845
        %850 = vst [vmem:[#allocation2 + $0x10] sm:$0xff] %v846
        %851 = vst [vmem:[#allocation2 + $0x18] sm:$0xff] %v847
      $region56: #{_fused_forward.1} parent=47 // pred_fallthru
        _
      %p852 = scmp.eq.s32.totalorder %s18, 2
      // Predicated region
      $region57: #{_fused_forward.1} parent=47 // pred_check
        %p853 = pneg %p852
      $region58: #{_fused_forward.1} parent=47 // pred_check_branch
        %855 = sbr.rel (%p853) target = $region60
      $region59: #{_fused_forward.1} parent=47 // pred_region
        %v856 = vld [vmem:[#allocation2] sm:$0xff]
        %v857 = vld [vmem:[#allocation2 + $0x8] sm:$0xff]
        %v858 = vld [vmem:[#allocation2 + $0x10] sm:$0xff]
        %v859 = vld [vmem:[#allocation2 + $0x18] sm:$0xff]
        %v860 = vld [vmem:[%s5] sm:$0xf]
        %v861 = vld [vmem:[%s5 + $0x4] sm:$0xf]
        %v862 = vld [vmem:[%s5 + $0x8] sm:$0xf]
        %v863 = vld [vmem:[%s5 + $0xc] sm:$0xf]
        %v864 = vld [vmem:[%s5 + $0x10] sm:$0xf]
        %v865 = vld [vmem:[%s5 + $0x14] sm:$0xf]
        %v866 = vld [vmem:[%s5 + $0x18] sm:$0xf]
        %v867 = vld [vmem:[%s5 + $0x1c] sm:$0xf]
        %v868 = vld [vmem:[%s5 + $0x20] sm:$0xf]
        %v869 = vld [vmem:[%s5 + $0x24] sm:$0xf]
        %v870 = vld [vmem:[%s5 + $0x28] sm:$0xf]
        %v871 = vld [vmem:[%s5 + $0x2c] sm:$0xf]
        %v872 = vld [vmem:[%s5 + $0x30] sm:$0xf]
        %v873 = vld [vmem:[%s5 + $0x34] sm:$0xf]
        %v874 = vld [vmem:[%s5 + $0x38] sm:$0xf]
        %v875 = vld [vmem:[%s5 + $0x3c] sm:$0xf]
        %v876 = vld [vmem:[%s6] sm:$0x1]
        %v878 = vlaneseq
        %v879 = vshrl.u32 %v878, 7
        %v880 = vsub.s32 0, %v879
        %v881 = vrot.slane %v876, %v880
        %v899 = vunpack.c.l.b16 %v860
        %v900 = vunpack.c.l.b16 %v861
        %v901 = vunpack.c.l.b16 %v862
        %v902 = vunpack.c.l.b16 %v863
        %v903 = vunpack.c.l.b16 %v864
        %v904 = vunpack.c.l.b16 %v865
        %v905 = vunpack.c.l.b16 %v866
        %v906 = vunpack.c.l.b16 %v867
        %v907 = vunpack.c.l.b16 %v868
        %v908 = vunpack.c.l.b16 %v869
        %v909 = vunpack.c.l.b16 %v870
        %v910 = vunpack.c.l.b16 %v871
        %v911 = vunpack.c.l.b16 %v872
        %v912 = vunpack.c.l.b16 %v873
        %v913 = vunpack.c.l.b16 %v874
        %v914 = vunpack.c.l.b16 %v875
        %v915 = vpack.c.b16 %v900, %v899
        %v916 = vpack.c.b16 %v902, %v901
        %v917 = vpack.c.b16 %v904, %v903
        %v918 = vpack.c.b16 %v906, %v905
        %v919 = vpack.c.b16 %v908, %v907
        %v920 = vpack.c.b16 %v910, %v909
        %v921 = vpack.c.b16 %v912, %v911
        %v922 = vpack.c.b16 %v914, %v913
        %931 = vmatprep.subr.bf16.mxu0 0
        %932 = vmatpush1.bf16.msra.mxu0 %v915
        %933 = vmatprep.subr.bf16.mxu0 0
        %934 = vmatpush1.bf16.msra.mxu0 %v916
        %935 = vmatprep.subr.bf16.mxu0 0
        %936 = vmatpush1.bf16.msra.mxu0 %v917
        %937 = vmatprep.subr.bf16.mxu0 0
        %938 = vmatpush1.bf16.msra.mxu0 %v918
        %939 = vmatprep.subr.bf16.mxu0 0
        %940 = vmatpush1.bf16.msra.mxu0 %v919
        %941 = vmatprep.subr.bf16.mxu0 0
        %942 = vmatpush1.bf16.msra.mxu0 %v920
        %943 = vmatprep.subr.bf16.mxu0 0
        %944 = vmatpush1.bf16.msra.mxu0 %v921
        %945 = vmatprep.subr.bf16.mxu0 0
        %946 = vmatpush1.bf16.msra.mxu0 %v922
        %947 = vmatprep.subr.bf16.mxu0 0
        %948 = vmatpush1.bf16.msra.mxu0 0
        %949 = vmatprep.subr.bf16.mxu0 0
        %950 = vmatpush1.bf16.msra.mxu0 0
        %951 = vmatprep.subr.bf16.mxu0 0
        %952 = vmatpush1.bf16.msra.mxu0 0
        %953 = vmatprep.subr.bf16.mxu0 0
        %954 = vmatpush1.bf16.msra.mxu0 0
        %955 = vmatprep.subr.bf16.mxu0 0
        %956 = vmatpush1.bf16.msra.mxu0 0
        %957 = vmatprep.subr.bf16.mxu0 0
        %958 = vmatpush1.bf16.msra.mxu0 0
        %959 = vmatprep.subr.bf16.mxu0 0
        %960 = vmatpush1.bf16.msra.mxu0 0
        %961 = vmatprep.subr.bf16.mxu0 0
        %962 = vmatpush1.bf16.msra.mxu0 0
        %963 = vmatprep.mubr.bf16.mxu0 0
        %964 = vmatmul.mubr.bf16.gmra.mrb[0].mxu0 %v856
        %v965 = vpop.f32.mrb[0].mxu0
        %v966 = vadd.f32 %v881, %v965
        %v967 = vpop.f32.mrb[0].mxu0
        %v968 = vpop.f32.mrb[0].mxu0
        %v969 = vadd.f32 %v881, %v968
        %v970 = vpop.f32.mrb[0].mxu0
        %971 = vmatprep.mubr.bf16.mxu0 0
        %972 = vmatmul.mubr.bf16.gmra.mrb[0].mxu0 %v857
        %v973 = vpop.f32.mrb[0].mxu0
        %v974 = vadd.f32 %v881, %v973
        %v975 = vpop.f32.mrb[0].mxu0
        %v976 = vpop.f32.mrb[0].mxu0
        %v977 = vadd.f32 %v881, %v976
        %v978 = vpop.f32.mrb[0].mxu0
        %979 = vmatprep.mubr.bf16.mxu0 0
        %980 = vmatmul.mubr.bf16.gmra.mrb[0].mxu0 %v858
        %v981 = vpop.f32.mrb[0].mxu0
        %v982 = vadd.f32 %v881, %v981
        %v983 = vpop.f32.mrb[0].mxu0
        %v984 = vpop.f32.mrb[0].mxu0
        %v985 = vadd.f32 %v881, %v984
        %v986 = vpop.f32.mrb[0].mxu0
        %987 = vmatprep.mubr.bf16.mxu0 0
        %988 = vmatmul.mubr.bf16.gmra.mrb[0].mxu0 %v859
        %v989 = vpop.f32.mrb[0].mxu0
        %v990 = vadd.f32 %v881, %v989
        %v991 = vpop.f32.mrb[0].mxu0
        %v992 = vpop.f32.mrb[0].mxu0
        %v993 = vadd.f32 %v881, %v992
        %v994 = vpop.f32.mrb[0].mxu0
        %995 = vdwg.mxu0
        %996 = vst [vmem:[%s7] sm:$0xff] %v966
        %997 = vst [vmem:[%s7 + $0x8] sm:$0xff] %v969
        %998 = vst [vmem:[%s7 + $0x10] sm:$0xff] %v974
        %999 = vst [vmem:[%s7 + $0x18] sm:$0xff] %v977
        %1000 = vst [vmem:[%s7 + $0x20] sm:$0xff] %v982
        %1001 = vst [vmem:[%s7 + $0x28] sm:$0xff] %v985
        %1002 = vst [vmem:[%s7 + $0x30] sm:$0xff] %v990
        %1003 = vst [vmem:[%s7 + $0x38] sm:$0xff] %v993
      $region60: #{_fused_forward.1} parent=47 // pred_fallthru
        _
      // Predicated region
      $region61: #{_fused_forward.1} parent=47 // pred_check
        %p1004 = pneg %p211
      $region62: #{_fused_forward.1} parent=47 // pred_check_branch
        %1006 = sbr.rel (%p1004) target = $region64
      $region63: #{_fused_forward.1} parent=47 // pred_region
        _
      $region64: #{_fused_forward.1} parent=47 // pred_fallthru
        _
      // Predicated region
      $region65: #{_fused_forward.1} parent=47 // pred_check
        %p1007 = pneg %p211
      $region66: #{_fused_forward.1} parent=47 // pred_check_branch
        %1009 = sbr.rel (%p1007) target = $region68
      $region67: #{_fused_forward.1} parent=47 // pred_region
        _
      $region68: #{_fused_forward.1} parent=47 // pred_fallthru
        _
    $region48: #{_fused_forward.1} parent=5 // pred_fallthru
      _
    %p1010 = scmp.le.s32.totalorder 2, %s13
    // Predicated region
    $region69: #{_fused_forward.1} parent=5 // pred_check
      %p1011 = pneg %p1010
    $region70: #{_fused_forward.1} parent=5 // pred_check_branch
      %1013 = sbr.rel (%p1011) target = $region72
    $region71: #{_fused_forward.1} parent=5 // pred_region
      %s1014 = ssub.s32 %s13, 2
    $region72: #{_fused_forward.1} parent=5 // pred_fallthru
      _
  $region6: #{_fused_forward.1} parent=0 // loop_footer
    %s17 = sadd.s32 1, %s13
  $region7: #{_fused_forward.1} parent=0 // loop_footer_branch
    %12 = sbr.rel target = $region3
  $region8: #{_fused_forward.1} parent=0 // loop_exit
    _

</llo_original>
